<compile_context>
chip_gen: v6e
topology: v6e:2x2x1
jax: 0.10.0
libtpu: 0.0.40
codegen_flags: <defaults>
</compile_context>

<pallas_src>
import functools

import jax
import jax.numpy as jnp
from jax.experimental import pallas as pl
from jax.experimental.pallas import tpu as pltpu


def dqn_kernel(x_ref, w1_ref, b1_ref, w2_ref, b2_ref, w3_ref, b3_ref,
               meps_ref, o_ref):
    # fc1 + relu.  x arrives f32; cast to bf16 only for the MXU operand
    # (f32 accumulation via preferred_element_type).  Bias add / ReLU /
    # epilogue stay f32 (important on v5e where the VPU has no bf16).
    x = x_ref[...].astype(jnp.bfloat16)
    h = jnp.dot(x, w1_ref[...], preferred_element_type=jnp.float32)
    h = jnp.maximum(h + b1_ref[...], 0.0)
    # fc2 + relu
    h = jnp.dot(h.astype(jnp.bfloat16), w2_ref[...],
                preferred_element_type=jnp.float32)
    h = jnp.maximum(h + b2_ref[...], 0.0)
    # fc3 + relu   (mask already folded into w3/b3 by prepare_params)
    h = jnp.dot(h.astype(jnp.bfloat16), w3_ref[...],
                preferred_element_type=jnp.float32)
    h = jnp.maximum(h + b3_ref[...], 0.0)
    # epilogue:  relu(x@(w3*mask)+b3*mask) + mask*1e-21  ==  relu(...)*mask + mask*1e-21
    o_ref[...] = h + meps_ref[...]


def prepare_params(w1, b1, w2, b2, w3, b3, mask):
    """One-time (per weight/mask update) prep: bf16 casts + mask folding.

    The {0,1} action mask commutes through ReLU, so it is folded into the
    last layer's weight/bias; the tiny additive constant is precomputed.
    Call this once and reuse the result across forward calls.
    """
    w1_bf = w1.astype(jnp.bfloat16)
    w2_bf = w2.astype(jnp.bfloat16)
    w3m = (w3 * mask).astype(jnp.bfloat16)
    b3m = (b3 * mask).astype(jnp.float32)
    mask_eps = (mask * jnp.float32(1e-21)).astype(jnp.float32)
    return (w1_bf, b1.astype(jnp.float32), w2_bf, b2.astype(jnp.float32),
            w3m, b3m, mask_eps)


def _round_up(n, m):
    return -(-n // m) * m


def _choose_batch_tile(B):
    """Pick (tb, B_pad): batch tile and padded batch size.

    - Small batches: one block, rounded up to a sublane multiple (8).
    - Large batches: target tb=512 (85% of HBM roofline at mem-bound tile
      sweeps), shrink to >=256 only to guarantee >=2 grid steps so v7x's two
      TensorCores both get work.  tb<=512 keeps double-buffered f32 output
      blocks (~4 MiB) well inside every generation's scoped VMEM default.
    """
    if B <= 256:
        tb = max(8, _round_up(B, 8))
        return tb, tb
    tb = 512
    if tb * 2 > B:          # make sure the grid has at least 2 steps
        tb = 256
    return tb, _round_up(B, tb)


def dqn_forward(x, params):
    """Fused DQN forward.  `params` comes from prepare_params()."""
    w1_bf, b1, w2_bf, b2, w3m, b3m, mask_eps = params
    B, D_in = x.shape
    H = w1_bf.shape[1]
    D_out = w3m.shape[1]

    tb, B_pad = _choose_batch_tile(B)
    if B_pad != B:
        x = jnp.pad(x, ((0, B_pad - B), (0, 0)))
    grid = (B_pad // tb,)

    flops = 2 * B_pad * (D_in * H + H * H + H * D_out)
    bytes_accessed = (B_pad * D_in * 4                       # x (f32 in)
                      + D_in * H * 2 + H * H * 2 + H * D_out * 2   # weights bf16
                      + 2 * H * 4 + 2 * D_out * 4            # biases / mask_eps
                      + B_pad * D_out * 4)                    # output f32

    out = pl.pallas_call(
        dqn_kernel,
        out_shape=jax.ShapeDtypeStruct((B_pad, D_out), jnp.float32),
        grid=grid,
        in_specs=[
            pl.BlockSpec((tb, D_in), lambda i: (i, 0)),     # x (f32, batch-tiled)
            pl.BlockSpec((D_in, H), lambda i: (0, 0)),      # w1 (bf16, resident)
            pl.BlockSpec((1, H), lambda i: (0, 0)),         # b1 (f32)
            pl.BlockSpec((H, H), lambda i: (0, 0)),         # w2 (bf16, resident)
            pl.BlockSpec((1, H), lambda i: (0, 0)),         # b2 (f32)
            pl.BlockSpec((H, D_out), lambda i: (0, 0)),     # w3 * mask (bf16)
            pl.BlockSpec((1, D_out), lambda i: (0, 0)),     # b3 * mask (f32)
            pl.BlockSpec((1, D_out), lambda i: (0, 0)),     # mask * 1e-21 (f32)
        ],
        out_specs=pl.BlockSpec((tb, D_out), lambda i: (i, 0)),
        compiler_params=pltpu.CompilerParams(
            dimension_semantics=("parallel",)),
        cost_estimate=pl.CostEstimate(
            flops=flops, transcendentals=0, bytes_accessed=bytes_accessed),
    )(x, w1_bf, b1, w2_bf, b2, w3m, b3m, mask_eps)

    return out[:B] if B_pad != B else out


def init_linear(key, fan_in, fan_out):
    # PyTorch nn.Linear default init: U(-1/sqrt(fan_in), 1/sqrt(fan_in)),
    # weight stored already transposed as (in, out).
    kw, kb = jax.random.split(key)
    bound = 1.0 / jnp.sqrt(jnp.float32(fan_in))
    w = jax.random.uniform(kw, (fan_in, fan_out), jnp.float32, -bound, bound)
    b = jax.random.uniform(kb, (1, fan_out), jnp.float32, -bound, bound)
    return w, b


def reference_forward_f32(x, w1, b1, w2, b2, w3, b3, mask):
    # Exact f32 port of the PyTorch module's forward.
    h = jnp.maximum(x @ w1 + b1, 0.0)
    h = jnp.maximum(h @ w2 + b2, 0.0)
    h = jnp.maximum(h @ w3 + b3, 0.0)
    return h * mask + mask * 1e-21


def reference_forward_bf16(x, w1, b1, w2, b2, w3, b3, mask):
    # Mirrors the kernel's numerics (bf16 matmul operands, f32 accum/epilogue).
    bf = jnp.bfloat16
    h = jnp.dot(x.astype(bf), w1.astype(bf), preferred_element_type=jnp.float32)
    h = jnp.maximum(h + b1, 0.0)
    h = jnp.dot(h.astype(bf), w2.astype(bf), preferred_element_type=jnp.float32)
    h = jnp.maximum(h + b2, 0.0)
    h = jnp.dot(h.astype(bf), (w3 * mask).astype(bf),
                preferred_element_type=jnp.float32)
    h = jnp.maximum(h + b3 * mask, 0.0)
    return h + mask * 1e-21


if __name__ == "__main__":
    # Small, tile-friendly shapes consistent with DQN(input, output, hidden):
    # output 1024 = 32*32 Q-value grid (calc_mask convention).
    B, D_in, H, D_out = 8, 128, 128, 1024

    key = jax.random.PRNGKey(0)
    kx, k1, k2, k3 = jax.random.split(key, 4)

    x = jax.random.normal(kx, (B, D_in), jnp.float32)
    w1, b1 = init_linear(k1, D_in, H)
    w2, b2 = init_linear(k2, H, H)
    w3, b3 = init_linear(k3, H, D_out)

    # Deterministic sparse {0,1} action mask like calc_mask() would produce.
    mask = (jnp.arange(D_out) % 7 == 0).astype(jnp.float32).reshape(1, D_out)

    # Weight prep is hoisted: done once, reused across forward calls.
    params = prepare_params(w1, b1, w2, b2, w3, b3, mask)

    out = dqn_forward(x, params)
    out = jax.block_until_ready(out)
    assert out.shape == (B, D_out)

    # Tight check against a reference with matching bf16 numerics.
    ref_bf16 = reference_forward_bf16(x, w1, b1, w2, b2, w3, b3, mask)
    assert jnp.allclose(out, ref_bf16, atol=2e-3, rtol=2e-3)

    # Loose check against the exact f32 PyTorch-semantics reference
    # (bf16 matmul operands introduce ~0.5% relative error).
    ref_f32 = reference_forward_f32(x, w1, b1, w2, b2, w3, b3, mask)
    assert jnp.allclose(out, ref_f32, atol=5e-2, rtol=5e-2)

    # Masked-out actions must be exactly zero (mask folded into w3/b3).
    assert jnp.all(jnp.where(mask == 0.0, out, 0.0) == 0.0)

    # Exercise the batch-padding path (B not a multiple of the sublane pack):
    B2 = 20
    x2 = jax.random.normal(jax.random.PRNGKey(1), (B2, D_in), jnp.float32)
    out2 = jax.block_until_ready(dqn_forward(x2, params))
    assert out2.shape == (B2, D_out)
    ref2 = reference_forward_bf16(x2, w1, b1, w2, b2, w3, b3, mask)
    assert jnp.allclose(out2, ref2, atol=2e-3, rtol=2e-3)

    print("KERNEL_OK")
</pallas_src>

<mosaic_0001>
module attributes {stable_mosaic.version = 11 : i64} {
  func.func @dqn_kernel(%arg0: i32, %arg1: memref<8x128xf32, #tpu.memory_space<vmem>>, %arg2: memref<128x128xbf16, #tpu.memory_space<vmem>>, %arg3: memref<1x128xf32, #tpu.memory_space<vmem>>, %arg4: memref<128x128xbf16, #tpu.memory_space<vmem>>, %arg5: memref<1x128xf32, #tpu.memory_space<vmem>>, %arg6: memref<128x1024xbf16, #tpu.memory_space<vmem>>, %arg7: memref<1x1024xf32, #tpu.memory_space<vmem>>, %arg8: memref<1x1024xf32, #tpu.memory_space<vmem>>, %arg9: memref<8x1024xf32, #tpu.memory_space<vmem>>) attributes {dimension_semantics = [#tpu.dimension_semantics<parallel>], iteration_bounds = array<i64: 1>, scalar_prefetch = 0 : i64, scratch_operands = 0 : i64, tpu.core_type = #tpu.core_type<tc>, window_params = [{transform_indices = @transform_0, window_bounds = array<i64: 8, 128>}, {pipeline_mode = #tpu.pipeline_mode<synchronous>, transform_indices = @transform_1, window_bounds = array<i64: 128, 128>}, {pipeline_mode = #tpu.pipeline_mode<synchronous>, transform_indices = @transform_2, window_bounds = array<i64: 1, 128>}, {pipeline_mode = #tpu.pipeline_mode<synchronous>, transform_indices = @transform_3, window_bounds = array<i64: 128, 128>}, {pipeline_mode = #tpu.pipeline_mode<synchronous>, transform_indices = @transform_4, window_bounds = array<i64: 1, 128>}, {pipeline_mode = #tpu.pipeline_mode<synchronous>, transform_indices = @transform_5, window_bounds = array<i64: 128, 1024>}, {pipeline_mode = #tpu.pipeline_mode<synchronous>, transform_indices = @transform_6, window_bounds = array<i64: 1, 1024>}, {pipeline_mode = #tpu.pipeline_mode<synchronous>, transform_indices = @transform_7, window_bounds = array<i64: 1, 1024>}, {transform_indices = @transform_8, window_bounds = array<i64: 8, 1024>}]} {
    %c0 = arith.constant 0 : index
    %c0_0 = arith.constant 0 : index
    %0 = vector.load %arg1[%c0, %c0_0] : memref<8x128xf32, #tpu.memory_space<vmem>>, vector<8x128xf32>
    %1 = arith.truncf %0 : vector<8x128xf32> to vector<8x128xbf16>
    %c0_1 = arith.constant 0 : index
    %c0_2 = arith.constant 0 : index
    %2 = vector.load %arg2[%c0_1, %c0_2] : memref<128x128xbf16, #tpu.memory_space<vmem>>, vector<128x128xbf16>
    %cst = arith.constant dense<0.000000e+00> : vector<8x128xf32>
    %3 = tpu.matmul %1, %2, %cst {dimension_numbers = #tpu.dot_dimension_numbers<[1], [0], [0], [1], [0, 0, 1, 1], [], []>} : vector<8x128xbf16>, vector<128x128xbf16>, vector<8x128xf32> -> vector<8x128xf32>
    %c0_3 = arith.constant 0 : index
    %c0_4 = arith.constant 0 : index
    %4 = vector.load %arg3[%c0_3, %c0_4] : memref<1x128xf32, #tpu.memory_space<vmem>>, vector<1x128xf32>
    %5 = vector.broadcast %4 : vector<1x128xf32> to vector<8x128xf32>
    %6 = arith.addf %3, %5 : vector<8x128xf32>
    %cst_5 = arith.constant 0.000000e+00 : f32
    %7 = vector.broadcast %cst_5 : f32 to vector<8x128xf32>
    %8 = arith.maximumf %6, %7 : vector<8x128xf32>
    %9 = arith.truncf %8 : vector<8x128xf32> to vector<8x128xbf16>
    %c0_6 = arith.constant 0 : index
    %c0_7 = arith.constant 0 : index
    %10 = vector.load %arg4[%c0_6, %c0_7] : memref<128x128xbf16, #tpu.memory_space<vmem>>, vector<128x128xbf16>
    %cst_8 = arith.constant dense<0.000000e+00> : vector<8x128xf32>
    %11 = tpu.matmul %9, %10, %cst_8 {dimension_numbers = #tpu.dot_dimension_numbers<[1], [0], [0], [1], [0, 0, 1, 1], [], []>} : vector<8x128xbf16>, vector<128x128xbf16>, vector<8x128xf32> -> vector<8x128xf32>
    %c0_9 = arith.constant 0 : index
    %c0_10 = arith.constant 0 : index
    %12 = vector.load %arg5[%c0_9, %c0_10] : memref<1x128xf32, #tpu.memory_space<vmem>>, vector<1x128xf32>
    %13 = vector.broadcast %12 : vector<1x128xf32> to vector<8x128xf32>
    %14 = arith.addf %11, %13 : vector<8x128xf32>
    %cst_11 = arith.constant 0.000000e+00 : f32
    %15 = vector.broadcast %cst_11 : f32 to vector<8x128xf32>
    %16 = arith.maximumf %14, %15 : vector<8x128xf32>
    %17 = arith.truncf %16 : vector<8x128xf32> to vector<8x128xbf16>
    %c0_12 = arith.constant 0 : index
    %c0_13 = arith.constant 0 : index
    %18 = vector.load %arg6[%c0_12, %c0_13] : memref<128x1024xbf16, #tpu.memory_space<vmem>>, vector<128x1024xbf16>
    %cst_14 = arith.constant dense<0.000000e+00> : vector<8x1024xf32>
    %19 = tpu.matmul %17, %18, %cst_14 {dimension_numbers = #tpu.dot_dimension_numbers<[1], [0], [0], [1], [0, 0, 1, 1], [], []>} : vector<8x128xbf16>, vector<128x1024xbf16>, vector<8x1024xf32> -> vector<8x1024xf32>
    %c0_15 = arith.constant 0 : index
    %c0_16 = arith.constant 0 : index
    %20 = vector.load %arg7[%c0_15, %c0_16] : memref<1x1024xf32, #tpu.memory_space<vmem>>, vector<1x1024xf32>
    %21 = vector.broadcast %20 : vector<1x1024xf32> to vector<8x1024xf32>
    %22 = arith.addf %19, %21 : vector<8x1024xf32>
    %cst_17 = arith.constant 0.000000e+00 : f32
    %23 = vector.broadcast %cst_17 : f32 to vector<8x1024xf32>
    %24 = arith.maximumf %22, %23 : vector<8x1024xf32>
    %c0_18 = arith.constant 0 : index
    %c0_19 = arith.constant 0 : index
    %25 = vector.load %arg8[%c0_18, %c0_19] : memref<1x1024xf32, #tpu.memory_space<vmem>>, vector<1x1024xf32>
    %26 = vector.broadcast %25 : vector<1x1024xf32> to vector<8x1024xf32>
    %27 = arith.addf %24, %26 : vector<8x1024xf32>
    %c0_20 = arith.constant 0 : index
    %c0_21 = arith.constant 0 : index
    %28 = vector.load %arg9[%c0_20, %c0_21] : memref<8x1024xf32, #tpu.memory_space<vmem>>, vector<8x1024xf32>
    tpu.vector_store %arg9[%c0_20, %c0_21], %27 {strides = array<i32>} : memref<8x1024xf32, #tpu.memory_space<vmem>>, vector<8x1024xf32>,
    return
  }
  func.func @transform_0(%arg0: i32) -> (i32, i32) {
    %c0_i32 = arith.constant 0 : i32
    %c0_i32_0 = arith.constant 0 : i32
    return %arg0, %c0_i32 : i32, i32
  }
  func.func @transform_1(%arg0: i32) -> (i32, i32) {
    %c0_i32 = arith.constant 0 : i32
    %c0_i32_0 = arith.constant 0 : i32
    %c0_i32_1 = arith.constant 0 : i32
    return %c0_i32, %c0_i32_0 : i32, i32
  }
  func.func @transform_2(%arg0: i32) -> (i32, i32) {
    %c0_i32 = arith.constant 0 : i32
    %c0_i32_0 = arith.constant 0 : i32
    %c0_i32_1 = arith.constant 0 : i32
    return %c0_i32, %c0_i32_0 : i32, i32
  }
  func.func @transform_3(%arg0: i32) -> (i32, i32) {
    %c0_i32 = arith.constant 0 : i32
    %c0_i32_0 = arith.constant 0 : i32
    %c0_i32_1 = arith.constant 0 : i32
    return %c0_i32, %c0_i32_0 : i32, i32
  }
  func.func @transform_4(%arg0: i32) -> (i32, i32) {
    %c0_i32 = arith.constant 0 : i32
    %c0_i32_0 = arith.constant 0 : i32
    %c0_i32_1 = arith.constant 0 : i32
    return %c0_i32, %c0_i32_0 : i32, i32
  }
  func.func @transform_5(%arg0: i32) -> (i32, i32) {
    %c0_i32 = arith.constant 0 : i32
    %c0_i32_0 = arith.constant 0 : i32
    %c0_i32_1 = arith.constant 0 : i32
    return %c0_i32, %c0_i32_0 : i32, i32
  }
  func.func @transform_6(%arg0: i32) -> (i32, i32) {
    %c0_i32 = arith.constant 0 : i32
    %c0_i32_0 = arith.constant 0 : i32
    %c0_i32_1 = arith.constant 0 : i32
    return %c0_i32, %c0_i32_0 : i32, i32
  }
  func.func @transform_7(%arg0: i32) -> (i32, i32) {
    %c0_i32 = arith.constant 0 : i32
    %c0_i32_0 = arith.constant 0 : i32
    %c0_i32_1 = arith.constant 0 : i32
    return %c0_i32, %c0_i32_0 : i32, i32
  }
  func.func @transform_8(%arg0: i32) -> (i32, i32) {
    %c0_i32 = arith.constant 0 : i32
    %c0_i32_0 = arith.constant 0 : i32
    return %arg0, %c0_i32 : i32, i32
  }
}

</mosaic_0001>

<llo_original>
// kernel: tpu_custom_call.1
$region0: #{tpu_custom_call.1}
  #allocation0 [shape = 'u32[]', space=smem, size = 0x4, offset = 0x4, fixed_abs, tag = 'smem constant byte address 0x4 - core index']
  #allocation1 [shape = 'u32[144,128]{1,0:T(1,128)}', space=vmem, size = 0x12000, scoped, tag = 'internal scratch']
  %s0 = inlined_call_operand.hbm [shape: f32[8,128], index: 0, kind: input, shape index: {}]
  %s1 = inlined_call_operand.hbm [shape: bf16[128,128], index: 1, kind: input, shape index: {}]
  %s2 = inlined_call_operand.vmem [shape: f32[1,128], index: 2, kind: input, shape index: {}]
  %s3 = inlined_call_operand.hbm [shape: bf16[128,128], index: 3, kind: input, shape index: {}]
  %s4 = inlined_call_operand.vmem [shape: f32[1,128], index: 4, kind: input, shape index: {}]
  %s5 = inlined_call_operand.hbm [shape: bf16[128,1024], index: 5, kind: input, shape index: {}]
  %s6 = inlined_call_operand.vmem [shape: f32[1,1024], index: 6, kind: input, shape index: {}]
  %s7 = inlined_call_operand.hbm [shape: f32[1,1024], index: 7, kind: input, shape index: {}]
  %s8 = inlined_call_operand.hbm [shape: f32[8,1024], index: 8, kind: output, shape index: {}]
  %s9 = sld [smem:[#allocation0]]
  $region62: #{tpu_custom_call.1} parent=0
    _
  %s11 = ssub.s32 1, %s9
  %s12 = scalar_select 0, %s11, %s9
  $region1: #{tpu_custom_call.1} parent=0
    #allocation2 [shape = 'u8[4096]{0}', space=vmem, size = 0x1000, scoped, tag = 'input window, operand 0, single buffered']
    #allocation3 [shape = 's32[1]{0}', space=sflag, size = 0x4, scoped, tag = 'scoped memory for tpu_custom_call.1']
    #allocation4 [shape = 's32[1]{0}', space=sflag, size = 0x4, scoped, tag = 'scoped memory for tpu_custom_call.1']
    #allocation5 [shape = 'u8[32768]{0}', space=vmem, size = 0x8000, scoped, tag = 'input window, operand 1, single buffered']
    #allocation6 [shape = 's32[1]{0}', space=sflag, size = 0x4, scoped, tag = 'scoped memory for tpu_custom_call.1']
    #allocation7 [shape = 'u8[32768]{0}', space=vmem, size = 0x8000, scoped, tag = 'input window, operand 3, single buffered']
    #allocation8 [shape = 'u8[262144]{0}', space=vmem, size = 0x40000, scoped, tag = 'input window, operand 5, single buffered']
    #allocation9 [shape = 's32[1]{0}', space=sflag, size = 0x4, scoped, tag = 'scoped memory for tpu_custom_call.1']
    #allocation10 [shape = 'u8[4096]{0}', space=vmem, size = 0x1000, scoped, tag = 'input window, operand 7, single buffered']
    #allocation11 [shape = 'u8[32768]{0}', space=vmem, size = 0x8000, scoped, tag = 'output window, operand 0, single buffered']
    %13 = vsyncpa [#allocation3], 0
    %14 = vsyncpa [#allocation6], 0
    %15 = vsyncpa [#allocation9], 0
    %16 = vsyncpa [#allocation4], 0
    // Predicated region
    $region2: #{tpu_custom_call.1} parent=1 // pred_check
      _
    $region3: #{tpu_custom_call.1} parent=1 // pred_check_branch
      %18 = sbr.rel (0) target = $region5
    $region4: #{tpu_custom_call.1} parent=1 // pred_region
      %s20 = ssub.s32 128, 128
      %21 = vsyncadd [#allocation3], %s20
      %s23 = sshll.u32 [#allocation2], 4
      %s24 = int_to_ptr.vmem [resolvable:$true] %s23
      %26 = dma.hbm_to_vmem [thread:$0]  %s0, 128, %s24, [#allocation3]
    $region5: #{tpu_custom_call.1} parent=1 // pred_fallthru
      _
    // Predicated region
    $region6: #{tpu_custom_call.1} parent=1 // pred_check
      _
    $region7: #{tpu_custom_call.1} parent=1 // pred_check_branch
      %28 = sbr.rel (0) target = $region9
    $region8: #{tpu_custom_call.1} parent=1 // pred_region
      %s30 = ssub.s32 1024, 1024
      %31 = vsyncadd [#allocation6], %s30
      %s32 = sshll.u32 [#allocation5], 4
      %s33 = int_to_ptr.vmem [resolvable:$true] %s32
      %38 = dma.hbm_to_vmem [thread:$0]  %s1, 1024, %s33, [#allocation6], 64, 64, 4
    $region9: #{tpu_custom_call.1} parent=1 // pred_fallthru
      _
    // Predicated region
    $region10: #{tpu_custom_call.1} parent=1 // pred_check
      _
    $region11: #{tpu_custom_call.1} parent=1 // pred_check_branch
      %40 = sbr.rel (0) target = $region13
    $region12: #{tpu_custom_call.1} parent=1 // pred_region
      _
    $region13: #{tpu_custom_call.1} parent=1 // pred_fallthru
      _
    // Predicated region
    $region14: #{tpu_custom_call.1} parent=1 // pred_check
      _
    $region15: #{tpu_custom_call.1} parent=1 // pred_check_branch
      %42 = sbr.rel (0) target = $region17
    $region16: #{tpu_custom_call.1} parent=1 // pred_region
      %s44 = ssub.s32 1024, 1024
      %45 = vsyncadd [#allocation6], %s44
      %s46 = sshll.u32 [#allocation7], 4
      %s47 = int_to_ptr.vmem [resolvable:$true] %s46
      %52 = dma.hbm_to_vmem [thread:$0]  %s3, 1024, %s47, [#allocation6], 64, 64, 4
    $region17: #{tpu_custom_call.1} parent=1 // pred_fallthru
      _
    // Predicated region
    $region18: #{tpu_custom_call.1} parent=1 // pred_check
      _
    $region19: #{tpu_custom_call.1} parent=1 // pred_check_branch
      %54 = sbr.rel (0) target = $region21
    $region20: #{tpu_custom_call.1} parent=1 // pred_region
      _
    $region21: #{tpu_custom_call.1} parent=1 // pred_fallthru
      _
    // Predicated region
    $region22: #{tpu_custom_call.1} parent=1 // pred_check
      _
    $region23: #{tpu_custom_call.1} parent=1 // pred_check_branch
      %56 = sbr.rel (0) target = $region25
    $region24: #{tpu_custom_call.1} parent=1 // pred_region
      %s58 = ssub.s32 8192, 8192
      %59 = vsyncadd [#allocation9], %s58
      %s60 = sshll.u32 [#allocation8], 4
      %s61 = int_to_ptr.vmem [resolvable:$true] %s60
      %66 = dma.hbm_to_vmem [thread:$0]  %s5, 8192, %s61, [#allocation9], 512, 512, 32
    $region25: #{tpu_custom_call.1} parent=1 // pred_fallthru
      _
    // Predicated region
    $region26: #{tpu_custom_call.1} parent=1 // pred_check
      _
    $region27: #{tpu_custom_call.1} parent=1 // pred_check_branch
      %68 = sbr.rel (0) target = $region29
    $region28: #{tpu_custom_call.1} parent=1 // pred_region
      _
    $region29: #{tpu_custom_call.1} parent=1 // pred_fallthru
      _
    // Predicated region
    $region30: #{tpu_custom_call.1} parent=1 // pred_check
      _
    $region31: #{tpu_custom_call.1} parent=1 // pred_check_branch
      %70 = sbr.rel (0) target = $region33
    $region32: #{tpu_custom_call.1} parent=1 // pred_region
      %s72 = ssub.s32 128, 128
      %73 = vsyncadd [#allocation9], %s72
      %s75 = sshll.u32 [#allocation10], 4
      %s76 = int_to_ptr.vmem [resolvable:$true] %s75
      %78 = dma.hbm_to_vmem [thread:$0]  %s7, 128, %s76, [#allocation9]
    $region33: #{tpu_custom_call.1} parent=1 // pred_fallthru
      _
    // Predicated region
    $region34: #{tpu_custom_call.1} parent=1 // pred_check
      _
    $region35: #{tpu_custom_call.1} parent=1 // pred_check_branch
      %80 = sbr.rel (0) target = $region37
    $region36: #{tpu_custom_call.1} parent=1 // pred_region
      %81 = dma.done [#allocation3], 128
    $region37: #{tpu_custom_call.1} parent=1 // pred_fallthru
      _
    // Predicated region
    $region38: #{tpu_custom_call.1} parent=1 // pred_check
      _
    $region39: #{tpu_custom_call.1} parent=1 // pred_check_branch
      %83 = sbr.rel (0) target = $region41
    $region40: #{tpu_custom_call.1} parent=1 // pred_region
      %84 = dma.done [#allocation6], 1024
    $region41: #{tpu_custom_call.1} parent=1 // pred_fallthru
      _
    // Predicated region
    $region42: #{tpu_custom_call.1} parent=1 // pred_check
      _
    $region43: #{tpu_custom_call.1} parent=1 // pred_check_branch
      %86 = sbr.rel (0) target = $region45
    $region44: #{tpu_custom_call.1} parent=1 // pred_region
      %87 = dma.done [#allocation6], 1024
    $region45: #{tpu_custom_call.1} parent=1 // pred_fallthru
      _
    // Predicated region
    $region46: #{tpu_custom_call.1} parent=1 // pred_check
      _
    $region47: #{tpu_custom_call.1} parent=1 // pred_check_branch
      %89 = sbr.rel (0) target = $region49
    $region48: #{tpu_custom_call.1} parent=1 // pred_region
      %90 = dma.done [#allocation9], 8192
    $region49: #{tpu_custom_call.1} parent=1 // pred_fallthru
      _
    // Predicated region
    $region50: #{tpu_custom_call.1} parent=1 // pred_check
      _
    $region51: #{tpu_custom_call.1} parent=1 // pred_check_branch
      %92 = sbr.rel (0) target = $region53
    $region52: #{tpu_custom_call.1} parent=1 // pred_region
      %93 = dma.done [#allocation9], 128
    $region53: #{tpu_custom_call.1} parent=1 // pred_fallthru
      _
    %v95 = vld [vmem:[#allocation2] sm:$0xff]
    %v96 = vpack.c.bf16 %v95, %v95
    %v97 = vld [vmem:[#allocation5] sm:$0xf]
    %v98 = vld [vmem:[#allocation5 + $0x4] sm:$0xf]
    %v99 = vld [vmem:[#allocation5 + $0x8] sm:$0xf]
    %v100 = vld [vmem:[#allocation5 + $0xc] sm:$0xf]
    %v101 = vld [vmem:[#allocation5 + $0x10] sm:$0xf]
    %v102 = vld [vmem:[#allocation5 + $0x14] sm:$0xf]
    %v103 = vld [vmem:[#allocation5 + $0x18] sm:$0xf]
    %v104 = vld [vmem:[#allocation5 + $0x1c] sm:$0xf]
    %v105 = vld [vmem:[#allocation5 + $0x20] sm:$0xf]
    %v106 = vld [vmem:[#allocation5 + $0x24] sm:$0xf]
    %v107 = vld [vmem:[#allocation5 + $0x28] sm:$0xf]
    %v108 = vld [vmem:[#allocation5 + $0x2c] sm:$0xf]
    %v109 = vld [vmem:[#allocation5 + $0x30] sm:$0xf]
    %v110 = vld [vmem:[#allocation5 + $0x34] sm:$0xf]
    %v111 = vld [vmem:[#allocation5 + $0x38] sm:$0xf]
    %v112 = vld [vmem:[#allocation5 + $0x3c] sm:$0xf]
    %v113 = vld [vmem:[%s2] sm:$0x1]
    %v115 = vlaneseq
    %v116 = vshrl.u32 %v115, 7
    %v117 = vsub.s32 0, %v116
    %v118 = vrot.slane %v113, %v117
    %v136 = vunpack.c.l.b16 %v97
    %v137 = vunpack.c.l.b16 %v98
    %v138 = vunpack.c.l.b16 %v99
    %v139 = vunpack.c.l.b16 %v100
    %v140 = vunpack.c.l.b16 %v101
    %v141 = vunpack.c.l.b16 %v102
    %v142 = vunpack.c.l.b16 %v103
    %v143 = vunpack.c.l.b16 %v104
    %v144 = vunpack.c.l.b16 %v105
    %v145 = vunpack.c.l.b16 %v106
    %v146 = vunpack.c.l.b16 %v107
    %v147 = vunpack.c.l.b16 %v108
    %v148 = vunpack.c.l.b16 %v109
    %v149 = vunpack.c.l.b16 %v110
    %v150 = vunpack.c.l.b16 %v111
    %v151 = vunpack.c.l.b16 %v112
    %v152 = vpack.c.b16 %v137, %v136
    %v153 = vpack.c.b16 %v139, %v138
    %v154 = vpack.c.b16 %v141, %v140
    %v155 = vpack.c.b16 %v143, %v142
    %v156 = vpack.c.b16 %v145, %v144
    %v157 = vpack.c.b16 %v147, %v146
    %v158 = vpack.c.b16 %v149, %v148
    %v159 = vpack.c.b16 %v151, %v150
    %168 = vmatprep.subr.bf16.mxu0 0
    %169 = vmatpush1.bf16.msra.mxu0 %v159
    %170 = vmatprep.subr.bf16.mxu0 0
    %171 = vmatpush1.bf16.msra.mxu0 %v158
    %172 = vmatprep.subr.bf16.mxu0 0
    %173 = vmatpush1.bf16.msra.mxu0 %v157
    %174 = vmatprep.subr.bf16.mxu0 0
    %175 = vmatpush1.bf16.msra.mxu0 %v156
    %176 = vmatprep.subr.bf16.mxu0 0
    %177 = vmatpush1.bf16.msra.mxu0 %v155
    %178 = vmatprep.subr.bf16.mxu0 0
    %179 = vmatpush1.bf16.msra.mxu0 %v154
    %180 = vmatprep.subr.bf16.mxu0 0
    %181 = vmatpush1.bf16.msra.mxu0 %v153
    %182 = vmatprep.subr.bf16.mxu0 0
    %183 = vmatpush1.bf16.msra.mxu0 %v152
    %184 = vmatprep.subr.bf16.mxu0 0
    %185 = vmatpush2.bf16.msra.mxu0 0
    %186 = vmatprep.subr.bf16.mxu0 0
    %187 = vmatpush2.bf16.msra.mxu0 0
    %188 = vmatprep.subr.bf16.mxu0 0
    %189 = vmatpush2.bf16.msra.mxu0 0
    %190 = vmatprep.subr.bf16.mxu0 0
    %191 = vmatpush2.bf16.msra.mxu0 0
    %192 = vmatprep.subr.bf16.mxu0 0
    %193 = vmatpush2.bf16.msra.mxu0 0
    %194 = vmatprep.subr.bf16.mxu0 0
    %195 = vmatpush2.bf16.msra.mxu0 0
    %196 = vmatprep.subr.bf16.mxu0 0
    %197 = vmatpush2.bf16.msra.mxu0 0
    %198 = vmatprep.subr.bf16.mxu0 0
    %199 = vmatpush2.bf16.msra.mxu0 0
    %200 = vmatprep.mubr.bf16.mxu0 0
    %201 = vmatmul.mubr.bf16.gmra.mxu0 %v96
    %v202 = vpop.f32.mrf.mxu0
    %v203 = vadd.f32 %v118, %v202
    %v204 = vpop.f32.mrf.mxu0
    %v205 = vpop.f32.mrf.mxu0
    %v206 = vpop.f32.mrf.mxu0
    %207 = vdwg.mxu0
    %v208 = vmax.f32 %v203, 0.0
    %v209 = vpack.c.bf16 %v208, %v208
    %v210 = vld [vmem:[#allocation7] sm:$0xf]
    %v211 = vld [vmem:[#allocation7 + $0x4] sm:$0xf]
    %v212 = vld [vmem:[#allocation7 + $0x8] sm:$0xf]
    %v213 = vld [vmem:[#allocation7 + $0xc] sm:$0xf]
    %v214 = vld [vmem:[#allocation7 + $0x10] sm:$0xf]
    %v215 = vld [vmem:[#allocation7 + $0x14] sm:$0xf]
    %v216 = vld [vmem:[#allocation7 + $0x18] sm:$0xf]
    %v217 = vld [vmem:[#allocation7 + $0x1c] sm:$0xf]
    %v218 = vld [vmem:[#allocation7 + $0x20] sm:$0xf]
    %v219 = vld [vmem:[#allocation7 + $0x24] sm:$0xf]
    %v220 = vld [vmem:[#allocation7 + $0x28] sm:$0xf]
    %v221 = vld [vmem:[#allocation7 + $0x2c] sm:$0xf]
    %v222 = vld [vmem:[#allocation7 + $0x30] sm:$0xf]
    %v223 = vld [vmem:[#allocation7 + $0x34] sm:$0xf]
    %v224 = vld [vmem:[#allocation7 + $0x38] sm:$0xf]
    %v225 = vld [vmem:[#allocation7 + $0x3c] sm:$0xf]
    %v226 = vld [vmem:[%s4] sm:$0x1]
    %v228 = vlaneseq
    %v229 = vshrl.u32 %v228, 7
    %v230 = vsub.s32 0, %v229
    %v231 = vrot.slane %v226, %v230
    %v249 = vunpack.c.l.b16 %v210
    %v250 = vunpack.c.l.b16 %v211
    %v251 = vunpack.c.l.b16 %v212
    %v252 = vunpack.c.l.b16 %v213
    %v253 = vunpack.c.l.b16 %v214
    %v254 = vunpack.c.l.b16 %v215
    %v255 = vunpack.c.l.b16 %v216
    %v256 = vunpack.c.l.b16 %v217
    %v257 = vunpack.c.l.b16 %v218
    %v258 = vunpack.c.l.b16 %v219
    %v259 = vunpack.c.l.b16 %v220
    %v260 = vunpack.c.l.b16 %v221
    %v261 = vunpack.c.l.b16 %v222
    %v262 = vunpack.c.l.b16 %v223
    %v263 = vunpack.c.l.b16 %v224
    %v264 = vunpack.c.l.b16 %v225
    %v265 = vpack.c.b16 %v250, %v249
    %v266 = vpack.c.b16 %v252, %v251
    %v267 = vpack.c.b16 %v254, %v253
    %v268 = vpack.c.b16 %v256, %v255
    %v269 = vpack.c.b16 %v258, %v257
    %v270 = vpack.c.b16 %v260, %v259
    %v271 = vpack.c.b16 %v262, %v261
    %v272 = vpack.c.b16 %v264, %v263
    %281 = vmatprep.subr.bf16.mxu0 0
    %282 = vmatpush1.bf16.msra.mxu0 %v272
    %283 = vmatprep.subr.bf16.mxu0 0
    %284 = vmatpush1.bf16.msra.mxu0 %v271
    %285 = vmatprep.subr.bf16.mxu0 0
    %286 = vmatpush1.bf16.msra.mxu0 %v270
    %287 = vmatprep.subr.bf16.mxu0 0
    %288 = vmatpush1.bf16.msra.mxu0 %v269
    %289 = vmatprep.subr.bf16.mxu0 0
    %290 = vmatpush1.bf16.msra.mxu0 %v268
    %291 = vmatprep.subr.bf16.mxu0 0
    %292 = vmatpush1.bf16.msra.mxu0 %v267
    %293 = vmatprep.subr.bf16.mxu0 0
    %294 = vmatpush1.bf16.msra.mxu0 %v266
    %295 = vmatprep.subr.bf16.mxu0 0
    %296 = vmatpush1.bf16.msra.mxu0 %v265
    %297 = vmatprep.subr.bf16.mxu0 0
    %298 = vmatpush2.bf16.msra.mxu0 0
    %299 = vmatprep.subr.bf16.mxu0 0
    %300 = vmatpush2.bf16.msra.mxu0 0
    %301 = vmatprep.subr.bf16.mxu0 0
    %302 = vmatpush2.bf16.msra.mxu0 0
    %303 = vmatprep.subr.bf16.mxu0 0
    %304 = vmatpush2.bf16.msra.mxu0 0
    %305 = vmatprep.subr.bf16.mxu0 0
    %306 = vmatpush2.bf16.msra.mxu0 0
    %307 = vmatprep.subr.bf16.mxu0 0
    %308 = vmatpush2.bf16.msra.mxu0 0
    %309 = vmatprep.subr.bf16.mxu0 0
    %310 = vmatpush2.bf16.msra.mxu0 0
    %311 = vmatprep.subr.bf16.mxu0 0
    %312 = vmatpush2.bf16.msra.mxu0 0
    %313 = vmatprep.mubr.bf16.mxu0 0
    %314 = vmatmul.mubr.bf16.gmra.mxu0 %v209
    %v315 = vpop.f32.mrf.mxu0
    %v316 = vadd.f32 %v231, %v315
    %v317 = vpop.f32.mrf.mxu0
    %v318 = vpop.f32.mrf.mxu0
    %v319 = vpop.f32.mrf.mxu0
    %320 = vdwg.mxu0
    %v321 = vmax.f32 %v316, 0.0
    %v322 = vpack.c.bf16 %v321, %v321
    %v323 = vld [vmem:[#allocation8] sm:$0xff]
    %v324 = vld [vmem:[#allocation8 + $0x8] sm:$0xff]
    %v325 = vld [vmem:[#allocation8 + $0x10] sm:$0xff]
    %v326 = vld [vmem:[#allocation8 + $0x18] sm:$0xff]
    %v327 = vld [vmem:[#allocation8 + $0x20] sm:$0xff]
    %v328 = vld [vmem:[#allocation8 + $0x28] sm:$0xff]
    %v329 = vld [vmem:[#allocation8 + $0x30] sm:$0xff]
    %v330 = vld [vmem:[#allocation8 + $0x38] sm:$0xff]
    %v331 = vld [vmem:[#allocation8 + $0x40] sm:$0xff]
    %v332 = vld [vmem:[#allocation8 + $0x48] sm:$0xff]
    %v333 = vld [vmem:[#allocation8 + $0x50] sm:$0xff]
    %v334 = vld [vmem:[#allocation8 + $0x58] sm:$0xff]
    %v335 = vld [vmem:[#allocation8 + $0x60] sm:$0xff]
    %v336 = vld [vmem:[#allocation8 + $0x68] sm:$0xff]
    %v337 = vld [vmem:[#allocation8 + $0x70] sm:$0xff]
    %v338 = vld [vmem:[#allocation8 + $0x78] sm:$0xff]
    %v339 = vld [vmem:[#allocation8 + $0x80] sm:$0xff]
    %v340 = vld [vmem:[#allocation8 + $0x88] sm:$0xff]
    %v341 = vld [vmem:[#allocation8 + $0x90] sm:$0xff]
    %v342 = vld [vmem:[#allocation8 + $0x98] sm:$0xff]
    %v343 = vld [vmem:[#allocation8 + $0xa0] sm:$0xff]
    %v344 = vld [vmem:[#allocation8 + $0xa8] sm:$0xff]
    %v345 = vld [vmem:[#allocation8 + $0xb0] sm:$0xff]
    %v346 = vld [vmem:[#allocation8 + $0xb8] sm:$0xff]
    %v347 = vld [vmem:[#allocation8 + $0xc0] sm:$0xff]
    %v348 = vld [vmem:[#allocation8 + $0xc8] sm:$0xff]
    %v349 = vld [vmem:[#allocation8 + $0xd0] sm:$0xff]
    %v350 = vld [vmem:[#allocation8 + $0xd8] sm:$0xff]
    %v351 = vld [vmem:[#allocation8 + $0xe0] sm:$0xff]
    %v352 = vld [vmem:[#allocation8 + $0xe8] sm:$0xff]
    %v353 = vld [vmem:[#allocation8 + $0xf0] sm:$0xff]
    %v354 = vld [vmem:[#allocation8 + $0xf8] sm:$0xff]
    %v355 = vld [vmem:[#allocation8 + $0x100] sm:$0xff]
    %v356 = vld [vmem:[#allocation8 + $0x108] sm:$0xff]
    %v357 = vld [vmem:[#allocation8 + $0x110] sm:$0xff]
    %v358 = vld [vmem:[#allocation8 + $0x118] sm:$0xff]
    %v359 = vld [vmem:[#allocation8 + $0x120] sm:$0xff]
    %v360 = vld [vmem:[#allocation8 + $0x128] sm:$0xff]
    %v361 = vld [vmem:[#allocation8 + $0x130] sm:$0xff]
    %v362 = vld [vmem:[#allocation8 + $0x138] sm:$0xff]
    %v363 = vld [vmem:[#allocation8 + $0x140] sm:$0xff]
    %v364 = vld [vmem:[#allocation8 + $0x148] sm:$0xff]
    %v365 = vld [vmem:[#allocation8 + $0x150] sm:$0xff]
    %v366 = vld [vmem:[#allocation8 + $0x158] sm:$0xff]
    %v367 = vld [vmem:[#allocation8 + $0x160] sm:$0xff]
    %v368 = vld [vmem:[#allocation8 + $0x168] sm:$0xff]
    %v369 = vld [vmem:[#allocation8 + $0x170] sm:$0xff]
    %v370 = vld [vmem:[#allocation8 + $0x178] sm:$0xff]
    %v371 = vld [vmem:[#allocation8 + $0x180] sm:$0xff]
    %v372 = vld [vmem:[#allocation8 + $0x188] sm:$0xff]
    %v373 = vld [vmem:[#allocation8 + $0x190] sm:$0xff]
    %v374 = vld [vmem:[#allocation8 + $0x198] sm:$0xff]
    %v375 = vld [vmem:[#allocation8 + $0x1a0] sm:$0xff]
    %v376 = vld [vmem:[#allocation8 + $0x1a8] sm:$0xff]
    %v377 = vld [vmem:[#allocation8 + $0x1b0] sm:$0xff]
    %v378 = vld [vmem:[#allocation8 + $0x1b8] sm:$0xff]
    %v379 = vld [vmem:[#allocation8 + $0x1c0] sm:$0xff]
    %v380 = vld [vmem:[#allocation8 + $0x1c8] sm:$0xff]
    %v381 = vld [vmem:[#allocation8 + $0x1d0] sm:$0xff]
    %v382 = vld [vmem:[#allocation8 + $0x1d8] sm:$0xff]
    %v383 = vld [vmem:[#allocation8 + $0x1e0] sm:$0xff]
    %v384 = vld [vmem:[#allocation8 + $0x1e8] sm:$0xff]
    %v385 = vld [vmem:[#allocation8 + $0x1f0] sm:$0xff]
    %v386 = vld [vmem:[#allocation8 + $0x1f8] sm:$0xff]
    %v387 = vld [vmem:[%s6] sm:$0xff]
    %v389 = vlaneseq
    %v390 = vshrl.u32 %v389, 7
    %v391 = vsub.s32 0, %v390
    %v392 = vrot.slane %v387, %v391
    %v393 = vlaneseq
    %v394 = vshrl.u32 %v393, 7
    %v395 = vsub.s32 1, %v394
    %v396 = vrot.slane %v387, %v395
    %v397 = vlaneseq
    %v398 = vshrl.u32 %v397, 7
    %v399 = vsub.s32 2, %v398
    %v400 = vrot.slane %v387, %v399
    %v401 = vlaneseq
    %v402 = vshrl.u32 %v401, 7
    %v403 = vsub.s32 3, %v402
    %v404 = vrot.slane %v387, %v403
    %v405 = vlaneseq
    %v406 = vshrl.u32 %v405, 7
    %v407 = vsub.s32 4, %v406
    %v408 = vrot.slane %v387, %v407
    %v409 = vlaneseq
    %v410 = vshrl.u32 %v409, 7
    %v411 = vsub.s32 5, %v410
    %v412 = vrot.slane %v387, %v411
    %v413 = vlaneseq
    %v414 = vshrl.u32 %v413, 7
    %v415 = vsub.s32 6, %v414
    %v416 = vrot.slane %v387, %v415
    %v417 = vlaneseq
    %v418 = vshrl.u32 %v417, 7
    %v419 = vsub.s32 7, %v418
    %v420 = vrot.slane %v387, %v419
    %v493 = vunpack.c.l.b16 %v323
    %v494 = vunpack.c.h.b16 %v323
    %v495 = vunpack.c.l.b16 %v324
    %v496 = vunpack.c.h.b16 %v324
    %v497 = vunpack.c.l.b16 %v325
    %v498 = vunpack.c.h.b16 %v325
    %v499 = vunpack.c.l.b16 %v326
    %v500 = vunpack.c.h.b16 %v326
    %v501 = vunpack.c.l.b16 %v327
    %v502 = vunpack.c.h.b16 %v327
    %v503 = vunpack.c.l.b16 %v328
    %v504 = vunpack.c.h.b16 %v328
    %v505 = vunpack.c.l.b16 %v329
    %v506 = vunpack.c.h.b16 %v329
    %v507 = vunpack.c.l.b16 %v330
    %v508 = vunpack.c.h.b16 %v330
    %v509 = vunpack.c.l.b16 %v331
    %v510 = vunpack.c.h.b16 %v331
    %v511 = vunpack.c.l.b16 %v332
    %v512 = vunpack.c.h.b16 %v332
    %v513 = vunpack.c.l.b16 %v333
    %v514 = vunpack.c.h.b16 %v333
    %v515 = vunpack.c.l.b16 %v334
    %v516 = vunpack.c.h.b16 %v334
    %v517 = vunpack.c.l.b16 %v335
    %v518 = vunpack.c.h.b16 %v335
    %v519 = vunpack.c.l.b16 %v336
    %v520 = vunpack.c.h.b16 %v336
    %v521 = vunpack.c.l.b16 %v337
    %v522 = vunpack.c.h.b16 %v337
    %v523 = vunpack.c.l.b16 %v338
    %v524 = vunpack.c.h.b16 %v338
    %v525 = vunpack.c.l.b16 %v339
    %v526 = vunpack.c.h.b16 %v339
    %v527 = vunpack.c.l.b16 %v340
    %v528 = vunpack.c.h.b16 %v340
    %v529 = vunpack.c.l.b16 %v341
    %v530 = vunpack.c.h.b16 %v341
    %v531 = vunpack.c.l.b16 %v342
    %v532 = vunpack.c.h.b16 %v342
    %v533 = vunpack.c.l.b16 %v343
    %v534 = vunpack.c.h.b16 %v343
    %v535 = vunpack.c.l.b16 %v344
    %v536 = vunpack.c.h.b16 %v344
    %v537 = vunpack.c.l.b16 %v345
    %v538 = vunpack.c.h.b16 %v345
    %v539 = vunpack.c.l.b16 %v346
    %v540 = vunpack.c.h.b16 %v346
    %v541 = vunpack.c.l.b16 %v347
    %v542 = vunpack.c.h.b16 %v347
    %v543 = vunpack.c.l.b16 %v348
    %v544 = vunpack.c.h.b16 %v348
    %v545 = vunpack.c.l.b16 %v349
    %v546 = vunpack.c.h.b16 %v349
    %v547 = vunpack.c.l.b16 %v350
    %v548 = vunpack.c.h.b16 %v350
    %v549 = vunpack.c.l.b16 %v351
    %v550 = vunpack.c.h.b16 %v351
    %v551 = vunpack.c.l.b16 %v352
    %v552 = vunpack.c.h.b16 %v352
    %v553 = vunpack.c.l.b16 %v353
    %v554 = vunpack.c.h.b16 %v353
    %v555 = vunpack.c.l.b16 %v354
    %v556 = vunpack.c.h.b16 %v354
    %v557 = vunpack.c.l.b16 %v355
    %v558 = vunpack.c.h.b16 %v355
    %v559 = vunpack.c.l.b16 %v356
    %v560 = vunpack.c.h.b16 %v356
    %v561 = vunpack.c.l.b16 %v357
    %v562 = vunpack.c.h.b16 %v357
    %v563 = vunpack.c.l.b16 %v358
    %v564 = vunpack.c.h.b16 %v358
    %v565 = vunpack.c.l.b16 %v359
    %v566 = vunpack.c.h.b16 %v359
    %v567 = vunpack.c.l.b16 %v360
    %v568 = vunpack.c.h.b16 %v360
    %v569 = vunpack.c.l.b16 %v361
    %v570 = vunpack.c.h.b16 %v361
    %v571 = vunpack.c.l.b16 %v362
    %v572 = vunpack.c.h.b16 %v362
    %v573 = vunpack.c.l.b16 %v363
    %v574 = vunpack.c.h.b16 %v363
    %v575 = vunpack.c.l.b16 %v364
    %v576 = vunpack.c.h.b16 %v364
    %v577 = vunpack.c.l.b16 %v365
    %v578 = vunpack.c.h.b16 %v365
    %v579 = vunpack.c.l.b16 %v366
    %v580 = vunpack.c.h.b16 %v366
    %v581 = vunpack.c.l.b16 %v367
    %v582 = vunpack.c.h.b16 %v367
    %v583 = vunpack.c.l.b16 %v368
    %v584 = vunpack.c.h.b16 %v368
    %v585 = vunpack.c.l.b16 %v369
    %v586 = vunpack.c.h.b16 %v369
    %v587 = vunpack.c.l.b16 %v370
    %v588 = vunpack.c.h.b16 %v370
    %v589 = vunpack.c.l.b16 %v371
    %v590 = vunpack.c.h.b16 %v371
    %v591 = vunpack.c.l.b16 %v372
    %v592 = vunpack.c.h.b16 %v372
    %v593 = vunpack.c.l.b16 %v373
    %v594 = vunpack.c.h.b16 %v373
    %v595 = vunpack.c.l.b16 %v374
    %v596 = vunpack.c.h.b16 %v374
    %v597 = vunpack.c.l.b16 %v375
    %v598 = vunpack.c.h.b16 %v375
    %v599 = vunpack.c.l.b16 %v376
    %v600 = vunpack.c.h.b16 %v376
    %v601 = vunpack.c.l.b16 %v377
    %v602 = vunpack.c.h.b16 %v377
    %v603 = vunpack.c.l.b16 %v378
    %v604 = vunpack.c.h.b16 %v378
    %v605 = vunpack.c.l.b16 %v379
    %v606 = vunpack.c.h.b16 %v379
    %v607 = vunpack.c.l.b16 %v380
    %v608 = vunpack.c.h.b16 %v380
    %v609 = vunpack.c.l.b16 %v381
    %v610 = vunpack.c.h.b16 %v381
    %v611 = vunpack.c.l.b16 %v382
    %v612 = vunpack.c.h.b16 %v382
    %v613 = vunpack.c.l.b16 %v383
    %v614 = vunpack.c.h.b16 %v383
    %v615 = vunpack.c.l.b16 %v384
    %v616 = vunpack.c.h.b16 %v384
    %v617 = vunpack.c.l.b16 %v385
    %v618 = vunpack.c.h.b16 %v385
    %v619 = vunpack.c.l.b16 %v386
    %v620 = vunpack.c.h.b16 %v386
    %v621 = vpack.c.b16 %v501, %v493
    %v622 = vpack.c.b16 %v502, %v494
    %v623 = vpack.c.b16 %v503, %v495
    %v624 = vpack.c.b16 %v504, %v496
    %v625 = vpack.c.b16 %v505, %v497
    %v626 = vpack.c.b16 %v506, %v498
    %v627 = vpack.c.b16 %v507, %v499
    %v628 = vpack.c.b16 %v508, %v500
    %v629 = vpack.c.b16 %v517, %v509
    %v630 = vpack.c.b16 %v518, %v510
    %v631 = vpack.c.b16 %v519, %v511
    %v632 = vpack.c.b16 %v520, %v512
    %v633 = vpack.c.b16 %v521, %v513
    %v634 = vpack.c.b16 %v522, %v514
    %v635 = vpack.c.b16 %v523, %v515
    %v636 = vpack.c.b16 %v524, %v516
    %v637 = vpack.c.b16 %v533, %v525
    %v638 = vpack.c.b16 %v534, %v526
    %v639 = vpack.c.b16 %v535, %v527
    %v640 = vpack.c.b16 %v536, %v528
    %v641 = vpack.c.b16 %v537, %v529
    %v642 = vpack.c.b16 %v538, %v530
    %v643 = vpack.c.b16 %v539, %v531
    %v644 = vpack.c.b16 %v540, %v532
    %v645 = vpack.c.b16 %v549, %v541
    %v646 = vpack.c.b16 %v550, %v542
    %v647 = vpack.c.b16 %v551, %v543
    %v648 = vpack.c.b16 %v552, %v544
    %v649 = vpack.c.b16 %v553, %v545
    %v650 = vpack.c.b16 %v554, %v546
    %v651 = vpack.c.b16 %v555, %v547
    %v652 = vpack.c.b16 %v556, %v548
    %v653 = vpack.c.b16 %v565, %v557
    %v654 = vpack.c.b16 %v566, %v558
    %v655 = vpack.c.b16 %v567, %v559
    %v656 = vpack.c.b16 %v568, %v560
    %v657 = vpack.c.b16 %v569, %v561
    %v658 = vpack.c.b16 %v570, %v562
    %v659 = vpack.c.b16 %v571, %v563
    %v660 = vpack.c.b16 %v572, %v564
    %v661 = vpack.c.b16 %v581, %v573
    %v662 = vpack.c.b16 %v582, %v574
    %v663 = vpack.c.b16 %v583, %v575
    %v664 = vpack.c.b16 %v584, %v576
    %v665 = vpack.c.b16 %v585, %v577
    %v666 = vpack.c.b16 %v586, %v578
    %v667 = vpack.c.b16 %v587, %v579
    %v668 = vpack.c.b16 %v588, %v580
    %v669 = vpack.c.b16 %v597, %v589
    %v670 = vpack.c.b16 %v598, %v590
    %v671 = vpack.c.b16 %v599, %v591
    %v672 = vpack.c.b16 %v600, %v592
    %v673 = vpack.c.b16 %v601, %v593
    %v674 = vpack.c.b16 %v602, %v594
    %v675 = vpack.c.b16 %v603, %v595
    %v676 = vpack.c.b16 %v604, %v596
    %v677 = vpack.c.b16 %v613, %v605
    %v678 = vpack.c.b16 %v614, %v606
    %v679 = vpack.c.b16 %v615, %v607
    %v680 = vpack.c.b16 %v616, %v608
    %v681 = vpack.c.b16 %v617, %v609
    %v682 = vpack.c.b16 %v618, %v610
    %v683 = vpack.c.b16 %v619, %v611
    %v684 = vpack.c.b16 %v620, %v612
    %749 = vmatprep.subr.bf16.mxu0 %v678
    %750 = vmatpush1.bf16.msra.mxu0 %v677
    %751 = vmatprep.subr.bf16.mxu0 %v670
    %752 = vmatpush1.bf16.msra.mxu0 %v669
    %753 = vmatprep.subr.bf16.mxu0 %v662
    %754 = vmatpush1.bf16.msra.mxu0 %v661
    %755 = vmatprep.subr.bf16.mxu0 %v654
    %756 = vmatpush1.bf16.msra.mxu0 %v653
    %757 = vmatprep.subr.bf16.mxu0 %v646
    %758 = vmatpush1.bf16.msra.mxu0 %v645
    %759 = vmatprep.subr.bf16.mxu0 %v638
    %760 = vmatpush1.bf16.msra.mxu0 %v637
    %761 = vmatprep.subr.bf16.mxu0 %v630
    %762 = vmatpush1.bf16.msra.mxu0 %v629
    %763 = vmatprep.subr.bf16.mxu0 %v622
    %764 = vmatpush1.bf16.msra.mxu0 %v621
    %765 = vmatprep.subr.bf16.mxu0 0
    %766 = vmatpush2.bf16.msra.mxu0 0
    %767 = vmatprep.subr.bf16.mxu0 0
    %768 = vmatpush2.bf16.msra.mxu0 0
    %769 = vmatprep.subr.bf16.mxu0 0
    %770 = vmatpush2.bf16.msra.mxu0 0
    %771 = vmatprep.subr.bf16.mxu0 0
    %772 = vmatpush2.bf16.msra.mxu0 0
    %773 = vmatprep.subr.bf16.mxu0 0
    %774 = vmatpush2.bf16.msra.mxu0 0
    %775 = vmatprep.subr.bf16.mxu0 0
    %776 = vmatpush2.bf16.msra.mxu0 0
    %777 = vmatprep.subr.bf16.mxu0 0
    %778 = vmatpush2.bf16.msra.mxu0 0
    %779 = vmatprep.subr.bf16.mxu0 0
    %780 = vmatpush2.bf16.msra.mxu0 0
    %781 = vmatprep.mubr.bf16.mxu0 0
    %782 = vmatmul.mubr.bf16.gmra.mxu0 %v322
    %v783 = vpop.f32.mrf.mxu0
    %v784 = vadd.f32 %v392, %v783
    %v785 = vpop.f32.mrf.mxu0
    %v786 = vadd.f32 %v396, %v785
    %v787 = vpop.f32.mrf.mxu0
    %v788 = vpop.f32.mrf.mxu0
    %789 = vdwg.mxu0
    %790 = vmatprep.subr.bf16.mxu0 %v680
    %791 = vmatpush1.bf16.msra.mxu0 %v679
    %792 = vmatprep.subr.bf16.mxu0 %v672
    %793 = vmatpush1.bf16.msra.mxu0 %v671
    %794 = vmatprep.subr.bf16.mxu0 %v664
    %795 = vmatpush1.bf16.msra.mxu0 %v663
    %796 = vmatprep.subr.bf16.mxu0 %v656
    %797 = vmatpush1.bf16.msra.mxu0 %v655
    %798 = vmatprep.subr.bf16.mxu0 %v648
    %799 = vmatpush1.bf16.msra.mxu0 %v647
    %800 = vmatprep.subr.bf16.mxu0 %v640
    %801 = vmatpush1.bf16.msra.mxu0 %v639
    %802 = vmatprep.subr.bf16.mxu0 %v632
    %803 = vmatpush1.bf16.msra.mxu0 %v631
    %804 = vmatprep.subr.bf16.mxu0 %v624
    %805 = vmatpush1.bf16.msra.mxu0 %v623
    %806 = vmatprep.subr.bf16.mxu0 0
    %807 = vmatpush2.bf16.msra.mxu0 0
    %808 = vmatprep.subr.bf16.mxu0 0
    %809 = vmatpush2.bf16.msra.mxu0 0
    %810 = vmatprep.subr.bf16.mxu0 0
    %811 = vmatpush2.bf16.msra.mxu0 0
    %812 = vmatprep.subr.bf16.mxu0 0
    %813 = vmatpush2.bf16.msra.mxu0 0
    %814 = vmatprep.subr.bf16.mxu0 0
    %815 = vmatpush2.bf16.msra.mxu0 0
    %816 = vmatprep.subr.bf16.mxu0 0
    %817 = vmatpush2.bf16.msra.mxu0 0
    %818 = vmatprep.subr.bf16.mxu0 0
    %819 = vmatpush2.bf16.msra.mxu0 0
    %820 = vmatprep.subr.bf16.mxu0 0
    %821 = vmatpush2.bf16.msra.mxu0 0
    %822 = vmatprep.mubr.bf16.mxu0 0
    %823 = vmatmul.mubr.bf16.gmra.mxu0 %v322
    %v824 = vpop.f32.mrf.mxu0
    %v825 = vadd.f32 %v400, %v824
    %v826 = vpop.f32.mrf.mxu0
    %v827 = vadd.f32 %v404, %v826
    %v828 = vpop.f32.mrf.mxu0
    %v829 = vpop.f32.mrf.mxu0
    %830 = vdwg.mxu0
    %831 = vmatprep.subr.bf16.mxu0 %v682
    %832 = vmatpush1.bf16.msra.mxu0 %v681
    %833 = vmatprep.subr.bf16.mxu0 %v674
    %834 = vmatpush1.bf16.msra.mxu0 %v673
    %835 = vmatprep.subr.bf16.mxu0 %v666
    %836 = vmatpush1.bf16.msra.mxu0 %v665
    %837 = vmatprep.subr.bf16.mxu0 %v658
    %838 = vmatpush1.bf16.msra.mxu0 %v657
    %839 = vmatprep.subr.bf16.mxu0 %v650
    %840 = vmatpush1.bf16.msra.mxu0 %v649
    %841 = vmatprep.subr.bf16.mxu0 %v642
    %842 = vmatpush1.bf16.msra.mxu0 %v641
    %843 = vmatprep.subr.bf16.mxu0 %v634
    %844 = vmatpush1.bf16.msra.mxu0 %v633
    %845 = vmatprep.subr.bf16.mxu0 %v626
    %846 = vmatpush1.bf16.msra.mxu0 %v625
    %847 = vmatprep.subr.bf16.mxu0 0
    %848 = vmatpush2.bf16.msra.mxu0 0
    %849 = vmatprep.subr.bf16.mxu0 0
    %850 = vmatpush2.bf16.msra.mxu0 0
    %851 = vmatprep.subr.bf16.mxu0 0
    %852 = vmatpush2.bf16.msra.mxu0 0
    %853 = vmatprep.subr.bf16.mxu0 0
    %854 = vmatpush2.bf16.msra.mxu0 0
    %855 = vmatprep.subr.bf16.mxu0 0
    %856 = vmatpush2.bf16.msra.mxu0 0
    %857 = vmatprep.subr.bf16.mxu0 0
    %858 = vmatpush2.bf16.msra.mxu0 0
    %859 = vmatprep.subr.bf16.mxu0 0
    %860 = vmatpush2.bf16.msra.mxu0 0
    %861 = vmatprep.subr.bf16.mxu0 0
    %862 = vmatpush2.bf16.msra.mxu0 0
    %863 = vmatprep.mubr.bf16.mxu0 0
    %864 = vmatmul.mubr.bf16.gmra.mxu0 %v322
    %v865 = vpop.f32.mrf.mxu0
    %v866 = vadd.f32 %v408, %v865
    %v867 = vpop.f32.mrf.mxu0
    %v868 = vadd.f32 %v412, %v867
    %v869 = vpop.f32.mrf.mxu0
    %v870 = vpop.f32.mrf.mxu0
    %871 = vdwg.mxu0
    %872 = vmatprep.subr.bf16.mxu0 %v684
    %873 = vmatpush1.bf16.msra.mxu0 %v683
    %874 = vmatprep.subr.bf16.mxu0 %v676
    %875 = vmatpush1.bf16.msra.mxu0 %v675
    %876 = vmatprep.subr.bf16.mxu0 %v668
    %877 = vmatpush1.bf16.msra.mxu0 %v667
    %878 = vmatprep.subr.bf16.mxu0 %v660
    %879 = vmatpush1.bf16.msra.mxu0 %v659
    %880 = vmatprep.subr.bf16.mxu0 %v652
    %881 = vmatpush1.bf16.msra.mxu0 %v651
    %882 = vmatprep.subr.bf16.mxu0 %v644
    %883 = vmatpush1.bf16.msra.mxu0 %v643
    %884 = vmatprep.subr.bf16.mxu0 %v636
    %885 = vmatpush1.bf16.msra.mxu0 %v635
    %886 = vmatprep.subr.bf16.mxu0 %v628
    %887 = vmatpush1.bf16.msra.mxu0 %v627
    %888 = vmatprep.subr.bf16.mxu0 0
    %889 = vmatpush2.bf16.msra.mxu0 0
    %890 = vmatprep.subr.bf16.mxu0 0
    %891 = vmatpush2.bf16.msra.mxu0 0
    %892 = vmatprep.subr.bf16.mxu0 0
    %893 = vmatpush2.bf16.msra.mxu0 0
    %894 = vmatprep.subr.bf16.mxu0 0
    %895 = vmatpush2.bf16.msra.mxu0 0
    %896 = vmatprep.subr.bf16.mxu0 0
    %897 = vmatpush2.bf16.msra.mxu0 0
    %898 = vmatprep.subr.bf16.mxu0 0
    %899 = vmatpush2.bf16.msra.mxu0 0
    %900 = vmatprep.subr.bf16.mxu0 0
    %901 = vmatpush2.bf16.msra.mxu0 0
    %902 = vmatprep.subr.bf16.mxu0 0
    %903 = vmatpush2.bf16.msra.mxu0 0
    %904 = vmatprep.mubr.bf16.mxu0 0
    %905 = vmatmul.mubr.bf16.gmra.mxu0 %v322
    %v906 = vpop.f32.mrf.mxu0
    %v907 = vadd.f32 %v416, %v906
    %v908 = vpop.f32.mrf.mxu0
    %v909 = vadd.f32 %v420, %v908
    %v910 = vpop.f32.mrf.mxu0
    %v911 = vpop.f32.mrf.mxu0
    %912 = vdwg.mxu0
    %v913 = vmax.f32 %v784, 0.0
    %v914 = vmax.f32 %v786, 0.0
    %v915 = vmax.f32 %v825, 0.0
    %v916 = vmax.f32 %v827, 0.0
    %v917 = vmax.f32 %v866, 0.0
    %v918 = vmax.f32 %v868, 0.0
    %v919 = vmax.f32 %v907, 0.0
    %v920 = vmax.f32 %v909, 0.0
    %v921 = vld [vmem:[#allocation10] sm:$0xff]
    %v923 = vlaneseq
    %v924 = vshrl.u32 %v923, 7
    %v925 = vsub.s32 0, %v924
    %v926 = vrot.slane %v921, %v925
    %v927 = vlaneseq
    %v928 = vshrl.u32 %v927, 7
    %v929 = vsub.s32 1, %v928
    %v930 = vrot.slane %v921, %v929
    %v931 = vlaneseq
    %v932 = vshrl.u32 %v931, 7
    %v933 = vsub.s32 2, %v932
    %v934 = vrot.slane %v921, %v933
    %v935 = vlaneseq
    %v936 = vshrl.u32 %v935, 7
    %v937 = vsub.s32 3, %v936
    %v938 = vrot.slane %v921, %v937
    %v939 = vlaneseq
    %v940 = vshrl.u32 %v939, 7
    %v941 = vsub.s32 4, %v940
    %v942 = vrot.slane %v921, %v941
    %v943 = vlaneseq
    %v944 = vshrl.u32 %v943, 7
    %v945 = vsub.s32 5, %v944
    %v946 = vrot.slane %v921, %v945
    %v947 = vlaneseq
    %v948 = vshrl.u32 %v947, 7
    %v949 = vsub.s32 6, %v948
    %v950 = vrot.slane %v921, %v949
    %v951 = vlaneseq
    %v952 = vshrl.u32 %v951, 7
    %v953 = vsub.s32 7, %v952
    %v954 = vrot.slane %v921, %v953
    %v963 = vadd.f32 %v913, %v926
    %v964 = vadd.f32 %v914, %v930
    %v965 = vadd.f32 %v915, %v934
    %v966 = vadd.f32 %v916, %v938
    %v967 = vadd.f32 %v917, %v942
    %v968 = vadd.f32 %v918, %v946
    %v969 = vadd.f32 %v919, %v950
    %v970 = vadd.f32 %v920, %v954
    %971 = vst [vmem:[#allocation11] sm:$0xff] %v963
    %972 = vst [vmem:[#allocation11 + $0x8] sm:$0xff] %v964
    %973 = vst [vmem:[#allocation11 + $0x10] sm:$0xff] %v965
    %974 = vst [vmem:[#allocation11 + $0x18] sm:$0xff] %v966
    %975 = vst [vmem:[#allocation11 + $0x20] sm:$0xff] %v967
    %976 = vst [vmem:[#allocation11 + $0x28] sm:$0xff] %v968
    %977 = vst [vmem:[#allocation11 + $0x30] sm:$0xff] %v969
    %978 = vst [vmem:[#allocation11 + $0x38] sm:$0xff] %v970
    // Predicated region
    $region54: #{tpu_custom_call.1} parent=1 // pred_check
      _
    $region55: #{tpu_custom_call.1} parent=1 // pred_check_branch
      %980 = sbr.rel (0) target = $region57
    $region56: #{tpu_custom_call.1} parent=1 // pred_region
      %s982 = ssub.s32 1024, 1024
      %983 = vsyncadd [#allocation4], %s982
      %s985 = sshll.u32 [#allocation11], 4
      %s986 = int_to_ptr.vmem [resolvable:$true] %s985
      %988 = dma.vmem_to_hbm [thread:$0]  %s986, 1024, %s8, [#allocation4]
    $region57: #{tpu_custom_call.1} parent=1 // pred_fallthru
      _
    // Predicated region
    $region58: #{tpu_custom_call.1} parent=1 // pred_check
      _
    $region59: #{tpu_custom_call.1} parent=1 // pred_check_branch
      %990 = sbr.rel (0) target = $region61
    $region60: #{tpu_custom_call.1} parent=1 // pred_region
      %991 = dma.done [#allocation4], 1024
    $region61: #{tpu_custom_call.1} parent=1 // pred_fallthru
      _
    %992 = vsyncpa [#allocation3], 1
    %993 = vsyncpa [#allocation6], 1
    %994 = vsyncpa [#allocation9], 1
    %995 = vsyncpa [#allocation4], 1

</llo_original>
